<compile_context>
chip_gen: v5e
topology: v5e:2x2
jax: 0.10.0
libtpu: 0.0.40
codegen_flags: <defaults>
</compile_context>

<pallas_src>
import functools

import jax
import jax.numpy as jnp
from jax.experimental import pallas as pl
from jax.experimental.pallas import tpu as pltpu


def _round_up(a, b):
    return (a + b - 1) // b * b


def _cdiv(a, b):
    return (a + b - 1) // b


def _make_mlp_kernel(num_layers):
    """Fused MLP kernel: num_layers x (Linear [+ ReLU except last]).

    Row-major blocks: x block is (tm, in_0), output block is (tm, out_last).
    Weights stay in PyTorch (out_i, in_i) layout, biases are (1, out_i).
    """

    def kernel(x_ref, *refs):
        # refs = (w0, b0, w1, b1, ..., w_{L-1}, b_{L-1}, o_ref)
        o_ref = refs[-1]
        h = x_ref[...]                                    # (tm, in_0), x dtype
        for i in range(num_layers):
            w = refs[2 * i][...]                          # (out_i, in_i)
            b = refs[2 * i + 1][...]                      # (1, out_i)
            # h @ W^T on the MXU in the weight dtype (bf16 fast path when the
            # params are bf16); accumulate in f32.
            h = jax.lax.dot_general(
                h.astype(w.dtype), w,
                dimension_numbers=(((1,), (1,)), ((), ())),
                preferred_element_type=jnp.float32)        # (tm, out_i), f32
            h = h + b.astype(jnp.float32)                  # broadcast bias
            if i < num_layers - 1:
                h = jnp.maximum(h, 0.0)                    # F.relu on all but last
        o_ref[...] = h.astype(o_ref.dtype)

    return kernel


def _param_spec(shape, single_buffer):
    """BlockSpec for a resident (constant index_map) weight/bias."""
    if single_buffer:
        # Single buffer halves the VMEM footprint of the resident params
        # (matters for real DINO-head sizes, especially under v7x's 64 MiB).
        return pl.BlockSpec(shape, lambda i: (0, 0), pipeline_mode=pl.Buffered(1))
    return pl.BlockSpec(shape, lambda i: (0, 0))


@functools.partial(jax.jit, static_argnames=("tm",))
def mlp_forward(x, weights, biases, *, tm=8192):
    """Run the MLP.

    x:       (..., input_dim)
    weights: list of (out_i, in_i) arrays (PyTorch nn.Linear layout)
    biases:  list of (1, out_i) arrays
    """
    num_layers = len(weights)
    input_dim = x.shape[-1]
    output_dim = weights[-1].shape[0]
    lead_shape = x.shape[:-1]

    x2d = x.reshape(-1, input_dim)
    n = x2d.shape[0]

    x_isz = jnp.dtype(x.dtype).itemsize
    feat_max = max([input_dim, output_dim] + [w.shape[0] for w in weights])
    param_bytes = sum(
        w.size * jnp.dtype(w.dtype).itemsize + b.size * jnp.dtype(b.dtype).itemsize
        for w, b in zip(weights, biases))
    # Single-buffer the resident params only when they are big enough to matter.
    single_buffer_params = param_bytes > (2 << 20)
    param_buf = 1 if single_buffer_params else 2

    # Generation-aware VMEM budget (~70% of physical: 128 MiB v5e/v6e, 64 MiB
    # v7x); conservative fallback if the query is unavailable.
    try:
        vmem_cap = int(0.7 * pltpu.get_tpu_info().vmem_capacity_bytes)
    except Exception:  # pragma: no cover - defensive fallback
        vmem_cap = int(0.7 * (64 << 20))

    def vmem_footprint(t):
        act_io = 2 * t * input_dim * x_isz + 2 * t * output_dim * x_isz  # dbl-buffered
        inter = 2 * t * feat_max * 4          # two live f32 intermediates per layer
        return act_io + inter + param_buf * param_bytes + (2 << 20)  # + scratch headroom

    # Batch tile selection (the kernel is step-overhead / HBM bound):
    #  - as large as possible (default 8192),
    #  - capped at ceil(n/2) so the grid has >= 2 steps (both v7x TensorCores),
    #  - shrunk until the VMEM footprint fits the generation budget,
    #  - never larger than needed to cover n (tiny batches stay tiny).
    tm_eff = min(_round_up(max(tm, 128), 128),
                 max(_round_up(_cdiv(n, 2), 128), 128))
    while tm_eff > 256 and vmem_footprint(tm_eff) > vmem_cap:
        tm_eff = max(256, _round_up(tm_eff // 2, 128))
    tm_eff = min(tm_eff, _round_up(n, 8))
    grid = _cdiv(n, tm_eff)

    kernel = _make_mlp_kernel(num_layers)

    in_specs = [pl.BlockSpec((tm_eff, input_dim), lambda i: (i, 0))]
    flat_params = []
    for w, b in zip(weights, biases):
        in_specs.append(_param_spec(w.shape, single_buffer_params))
        in_specs.append(_param_spec(b.shape, single_buffer_params))
        flat_params += [w, b]
    # TODO(synk): if the per-step DMA ever shows as exposed at small forced
    # tiles, bump the x spec to pipeline_mode=pl.Buffered(3) (deeper prefetch)
    # instead of adding grid axes.

    flops = 2 * sum(n * w.shape[0] * w.shape[1] for w in weights)
    io_bytes = n * (input_dim + output_dim) * x_isz + param_bytes

    out2d = pl.pallas_call(
        kernel,
        out_shape=jax.ShapeDtypeStruct((n, output_dim), x.dtype),
        grid_spec=pltpu.PrefetchScalarGridSpec(
            num_scalar_prefetch=0,
            grid=(grid,),
            in_specs=in_specs,
            out_specs=pl.BlockSpec((tm_eff, output_dim), lambda i: (i, 0)),
        ),
        compiler_params=pltpu.CompilerParams(
            dimension_semantics=("parallel",),
            vmem_limit_bytes=int(vmem_cap),
        ),
        cost_estimate=pl.CostEstimate(
            flops=flops, transcendentals=0, bytes_accessed=io_bytes),
    )(x2d, *flat_params)

    return out2d.reshape(*lead_shape, output_dim)


def init_mlp_params(key, input_dim, hidden_dim, output_dim, num_layers,
                    dtype=jnp.float32):
    """Deterministic synthetic init matching nn.Linear shapes (PyTorch layout)."""
    h = [hidden_dim] * (num_layers - 1)
    dims = list(zip([input_dim] + h, h + [output_dim]))
    weights, biases = [], []
    for (n_in, n_out) in dims:
        kw, kb, key = jax.random.split(key, 3)
        bound = 1.0 / (n_in ** 0.5)
        weights.append(jax.random.uniform(
            kw, (n_out, n_in), dtype, minval=-bound, maxval=bound))
        biases.append(jax.random.uniform(
            kb, (1, n_out), dtype, minval=-bound, maxval=bound))
    return weights, biases


def mlp_reference(x, weights, biases):
    """Plain-JAX reference of the PyTorch forward (x @ W.T + b)."""
    num_layers = len(weights)
    h = x
    for i, (w, b) in enumerate(zip(weights, biases)):
        h = h @ w.T + b[0]
        if i < num_layers - 1:
            h = jnp.maximum(h, 0.0)
    return h


if __name__ == "__main__":
    key = jax.random.PRNGKey(0)

    # Small shapes consistent with DINO's MLP head usage: (batch, queries, dim)
    batch, queries = 2, 8
    input_dim, hidden_dim, output_dim, num_layers = 32, 64, 16, 3

    kx, kx2, kp = jax.random.split(key, 3)
    x = jax.random.normal(kx, (batch, queries, input_dim), dtype=jnp.float32)
    weights, biases = init_mlp_params(
        kp, input_dim, hidden_dim, output_dim, num_layers)

    out = mlp_forward(x, weights, biases)
    out = jax.block_until_ready(out)
    ref = mlp_reference(x, weights, biases)
    assert out.shape == (batch, queries, output_dim), out.shape
    assert jnp.allclose(out, ref, atol=1e-5, rtol=1e-5), \
        float(jnp.max(jnp.abs(out - ref)))

    # Second check: ragged batch (not divisible by the tile) with a multi-step
    # grid — exercises Pallas boundary clipping and the grid>=2 (two-TC) cap.
    x2 = jax.random.normal(kx2, (3, 130, input_dim), dtype=jnp.float32)
    out2 = mlp_forward(x2, weights, biases)
    out2 = jax.block_until_ready(out2)
    ref2 = mlp_reference(x2, weights, biases)
    assert out2.shape == (3, 130, output_dim), out2.shape
    assert jnp.allclose(out2, ref2, atol=1e-5, rtol=1e-5), \
        float(jnp.max(jnp.abs(out2 - ref2)))

    print("KERNEL_OK")
</pallas_src>

<mosaic_0001>
module attributes {stable_mosaic.version = 11 : i64} {
  func.func @kernel(%arg0: i32, %arg1: memref<16x32xf32, #tpu.memory_space<vmem>>, %arg2: memref<64x32xf32, #tpu.memory_space<vmem>>, %arg3: memref<1x64xf32, #tpu.memory_space<vmem>>, %arg4: memref<64x64xf32, #tpu.memory_space<vmem>>, %arg5: memref<1x64xf32, #tpu.memory_space<vmem>>, %arg6: memref<16x64xf32, #tpu.memory_space<vmem>>, %arg7: memref<1x16xf32, #tpu.memory_space<vmem>>, %arg8: memref<16x16xf32, #tpu.memory_space<vmem>>) attributes {dimension_semantics = [#tpu.dimension_semantics<parallel>], iteration_bounds = array<i64: 1>, scalar_prefetch = 0 : i64, scratch_operands = 0 : i64, tpu.core_type = #tpu.core_type<tc>, window_params = [{transform_indices = @transform_0, window_bounds = array<i64: 16, 32>}, {pipeline_mode = #tpu.pipeline_mode<synchronous>, transform_indices = @transform_1, window_bounds = array<i64: 64, 32>}, {pipeline_mode = #tpu.pipeline_mode<synchronous>, transform_indices = @transform_2, window_bounds = array<i64: 1, 64>}, {pipeline_mode = #tpu.pipeline_mode<synchronous>, transform_indices = @transform_3, window_bounds = array<i64: 64, 64>}, {pipeline_mode = #tpu.pipeline_mode<synchronous>, transform_indices = @transform_4, window_bounds = array<i64: 1, 64>}, {pipeline_mode = #tpu.pipeline_mode<synchronous>, transform_indices = @transform_5, window_bounds = array<i64: 16, 64>}, {pipeline_mode = #tpu.pipeline_mode<synchronous>, transform_indices = @transform_6, window_bounds = array<i64: 1, 16>}, {transform_indices = @transform_7, window_bounds = array<i64: 16, 16>}]} {
    %c0 = arith.constant 0 : index
    %c0_0 = arith.constant 0 : index
    %0 = vector.load %arg1[%c0, %c0_0] : memref<16x32xf32, #tpu.memory_space<vmem>>, vector<16x32xf32>
    %c0_1 = arith.constant 0 : index
    %c0_2 = arith.constant 0 : index
    %1 = vector.load %arg2[%c0_1, %c0_2] : memref<64x32xf32, #tpu.memory_space<vmem>>, vector<64x32xf32>
    %c0_3 = arith.constant 0 : index
    %c0_4 = arith.constant 0 : index
    %2 = vector.load %arg3[%c0_3, %c0_4] : memref<1x64xf32, #tpu.memory_space<vmem>>, vector<1x64xf32>
    %cst = arith.constant dense<0.000000e+00> : vector<16x64xf32>
    %3 = tpu.matmul %0, %1, %cst {dimension_numbers = #tpu.dot_dimension_numbers<[1], [1], [0], [0], [0, 0, 1, 0], [], []>} : vector<16x32xf32>, vector<64x32xf32>, vector<16x64xf32> -> vector<16x64xf32>
    %4 = vector.broadcast %2 : vector<1x64xf32> to vector<16x64xf32>
    %5 = arith.addf %3, %4 : vector<16x64xf32>
    %cst_5 = arith.constant 0.000000e+00 : f32
    %6 = vector.broadcast %cst_5 : f32 to vector<16x64xf32>
    %7 = arith.maximumf %5, %6 : vector<16x64xf32>
    %c0_6 = arith.constant 0 : index
    %c0_7 = arith.constant 0 : index
    %8 = vector.load %arg4[%c0_6, %c0_7] : memref<64x64xf32, #tpu.memory_space<vmem>>, vector<64x64xf32>
    %c0_8 = arith.constant 0 : index
    %c0_9 = arith.constant 0 : index
    %9 = vector.load %arg5[%c0_8, %c0_9] : memref<1x64xf32, #tpu.memory_space<vmem>>, vector<1x64xf32>
    %cst_10 = arith.constant dense<0.000000e+00> : vector<16x64xf32>
    %10 = tpu.matmul %7, %8, %cst_10 {dimension_numbers = #tpu.dot_dimension_numbers<[1], [1], [0], [0], [0, 0, 1, 0], [], []>} : vector<16x64xf32>, vector<64x64xf32>, vector<16x64xf32> -> vector<16x64xf32>
    %11 = vector.broadcast %9 : vector<1x64xf32> to vector<16x64xf32>
    %12 = arith.addf %10, %11 : vector<16x64xf32>
    %cst_11 = arith.constant 0.000000e+00 : f32
    %13 = vector.broadcast %cst_11 : f32 to vector<16x64xf32>
    %14 = arith.maximumf %12, %13 : vector<16x64xf32>
    %c0_12 = arith.constant 0 : index
    %c0_13 = arith.constant 0 : index
    %15 = vector.load %arg6[%c0_12, %c0_13] : memref<16x64xf32, #tpu.memory_space<vmem>>, vector<16x64xf32>
    %c0_14 = arith.constant 0 : index
    %c0_15 = arith.constant 0 : index
    %16 = vector.load %arg7[%c0_14, %c0_15] : memref<1x16xf32, #tpu.memory_space<vmem>>, vector<1x16xf32>
    %cst_16 = arith.constant dense<0.000000e+00> : vector<16x16xf32>
    %17 = tpu.matmul %14, %15, %cst_16 {dimension_numbers = #tpu.dot_dimension_numbers<[1], [1], [0], [0], [0, 0, 1, 0], [], []>} : vector<16x64xf32>, vector<16x64xf32>, vector<16x16xf32> -> vector<16x16xf32>
    %18 = vector.broadcast %16 : vector<1x16xf32> to vector<16x16xf32>
    %19 = arith.addf %17, %18 : vector<16x16xf32>
    %c0_17 = arith.constant 0 : index
    %c0_18 = arith.constant 0 : index
    %20 = vector.load %arg8[%c0_17, %c0_18] : memref<16x16xf32, #tpu.memory_space<vmem>>, vector<16x16xf32>
    tpu.vector_store %arg8[%c0_17, %c0_18], %19 {strides = array<i32>} : memref<16x16xf32, #tpu.memory_space<vmem>>, vector<16x16xf32>,
    return
  }
  func.func @transform_0(%arg0: i32) -> (i32, i32) {
    %c0_i32 = arith.constant 0 : i32
    %c0_i32_0 = arith.constant 0 : i32
    return %arg0, %c0_i32 : i32, i32
  }
  func.func @transform_1(%arg0: i32) -> (i32, i32) {
    %c0_i32 = arith.constant 0 : i32
    %c0_i32_0 = arith.constant 0 : i32
    %c0_i32_1 = arith.constant 0 : i32
    return %c0_i32, %c0_i32_0 : i32, i32
  }
  func.func @transform_2(%arg0: i32) -> (i32, i32) {
    %c0_i32 = arith.constant 0 : i32
    %c0_i32_0 = arith.constant 0 : i32
    %c0_i32_1 = arith.constant 0 : i32
    return %c0_i32, %c0_i32_0 : i32, i32
  }
  func.func @transform_3(%arg0: i32) -> (i32, i32) {
    %c0_i32 = arith.constant 0 : i32
    %c0_i32_0 = arith.constant 0 : i32
    %c0_i32_1 = arith.constant 0 : i32
    return %c0_i32, %c0_i32_0 : i32, i32
  }
  func.func @transform_4(%arg0: i32) -> (i32, i32) {
    %c0_i32 = arith.constant 0 : i32
    %c0_i32_0 = arith.constant 0 : i32
    %c0_i32_1 = arith.constant 0 : i32
    return %c0_i32, %c0_i32_0 : i32, i32
  }
  func.func @transform_5(%arg0: i32) -> (i32, i32) {
    %c0_i32 = arith.constant 0 : i32
    %c0_i32_0 = arith.constant 0 : i32
    %c0_i32_1 = arith.constant 0 : i32
    return %c0_i32, %c0_i32_0 : i32, i32
  }
  func.func @transform_6(%arg0: i32) -> (i32, i32) {
    %c0_i32 = arith.constant 0 : i32
    %c0_i32_0 = arith.constant 0 : i32
    %c0_i32_1 = arith.constant 0 : i32
    return %c0_i32, %c0_i32_0 : i32, i32
  }
  func.func @transform_7(%arg0: i32) -> (i32, i32) {
    %c0_i32 = arith.constant 0 : i32
    %c0_i32_0 = arith.constant 0 : i32
    return %arg0, %c0_i32 : i32, i32
  }
}

</mosaic_0001>

<llo_original>
// kernel: mlp_forward.1
$region0: #{mlp_forward.1}
  #allocation0 [shape = 'u32[]', space=smem, size = 0x4, offset = 0x4, fixed_abs, tag = 'smem constant byte address 0x4 - core index']
  #allocation1 [shape = 'u32[72,128]{1,0:T(1,128)}', space=vmem, size = 0x9000, scoped, tag = 'internal scratch']
  %s0 = inlined_call_operand.vmem [shape: f32[16,32], index: 0, kind: input, shape index: {}]
  %s1 = inlined_call_operand.vmem [shape: f32[64,32], index: 1, kind: input, shape index: {}]
  %s2 = inlined_call_operand.vmem [shape: f32[1,64], index: 2, kind: input, shape index: {}]
  %s3 = inlined_call_operand.vmem [shape: f32[64,64], index: 3, kind: input, shape index: {}]
  %s4 = inlined_call_operand.vmem [shape: f32[1,64], index: 4, kind: input, shape index: {}]
  %s5 = inlined_call_operand.vmem [shape: f32[16,64], index: 5, kind: input, shape index: {}]
  %s6 = inlined_call_operand.vmem [shape: f32[1,16], index: 6, kind: input, shape index: {}]
  %s7 = inlined_call_operand.hbm [shape: f32[16,16], index: 7, kind: output, shape index: {}]
  %s8 = sld [smem:[#allocation0]]
  $region38: #{mlp_forward.1} parent=0
    _
  %s10 = ssub.s32 1, %s8
  %s11 = scalar_select 0, %s10, %s8
  $region1: #{mlp_forward.1} parent=0
    #allocation2 [shape = 'u8[8192]{0}', space=vmem, size = 0x2000, scoped, tag = 'output window, operand 0, single buffered']
    #allocation3 [shape = 's32[1]{0}', space=sflag, size = 0x4, scoped, tag = 'scoped memory for mlp_forward.1']
    %12 = vsyncpa [#allocation3], 0
    // Predicated region
    $region2: #{mlp_forward.1} parent=1 // pred_check
      _
    $region3: #{mlp_forward.1} parent=1 // pred_check_branch
      %14 = sbr.rel (0) target = $region5
    $region4: #{mlp_forward.1} parent=1 // pred_region
      _
    $region5: #{mlp_forward.1} parent=1 // pred_fallthru
      _
    // Predicated region
    $region6: #{mlp_forward.1} parent=1 // pred_check
      _
    $region7: #{mlp_forward.1} parent=1 // pred_check_branch
      %16 = sbr.rel (0) target = $region9
    $region8: #{mlp_forward.1} parent=1 // pred_region
      _
    $region9: #{mlp_forward.1} parent=1 // pred_fallthru
      _
    // Predicated region
    $region10: #{mlp_forward.1} parent=1 // pred_check
      _
    $region11: #{mlp_forward.1} parent=1 // pred_check_branch
      %18 = sbr.rel (0) target = $region13
    $region12: #{mlp_forward.1} parent=1 // pred_region
      _
    $region13: #{mlp_forward.1} parent=1 // pred_fallthru
      _
    // Predicated region
    $region14: #{mlp_forward.1} parent=1 // pred_check
      _
    $region15: #{mlp_forward.1} parent=1 // pred_check_branch
      %20 = sbr.rel (0) target = $region17
    $region16: #{mlp_forward.1} parent=1 // pred_region
      _
    $region17: #{mlp_forward.1} parent=1 // pred_fallthru
      _
    // Predicated region
    $region18: #{mlp_forward.1} parent=1 // pred_check
      _
    $region19: #{mlp_forward.1} parent=1 // pred_check_branch
      %22 = sbr.rel (0) target = $region21
    $region20: #{mlp_forward.1} parent=1 // pred_region
      _
    $region21: #{mlp_forward.1} parent=1 // pred_fallthru
      _
    // Predicated region
    $region22: #{mlp_forward.1} parent=1 // pred_check
      _
    $region23: #{mlp_forward.1} parent=1 // pred_check_branch
      %24 = sbr.rel (0) target = $region25
    $region24: #{mlp_forward.1} parent=1 // pred_region
      _
    $region25: #{mlp_forward.1} parent=1 // pred_fallthru
      _
    // Predicated region
    $region26: #{mlp_forward.1} parent=1 // pred_check
      _
    $region27: #{mlp_forward.1} parent=1 // pred_check_branch
      %26 = sbr.rel (0) target = $region29
    $region28: #{mlp_forward.1} parent=1 // pred_region
      _
    $region29: #{mlp_forward.1} parent=1 // pred_fallthru
      _
    %v27 = vld [vmem:[%s0] sm:$0xff]
    %v28 = vld [vmem:[%s0 + $0x8] sm:$0xff]
    %v29 = vld [vmem:[%s1] sm:$0xff]
    %v30 = vld [vmem:[%s1 + $0x8] sm:$0xff]
    %v31 = vld [vmem:[%s1 + $0x10] sm:$0xff]
    %v32 = vld [vmem:[%s1 + $0x18] sm:$0xff]
    %v33 = vld [vmem:[%s1 + $0x20] sm:$0xff]
    %v34 = vld [vmem:[%s1 + $0x28] sm:$0xff]
    %v35 = vld [vmem:[%s1 + $0x30] sm:$0xff]
    %v36 = vld [vmem:[%s1 + $0x38] sm:$0xff]
    %v37 = vld [vmem:[%s2] sm:$0x1]
    %v39 = vperm.slane %v37, 0
    %vm41 = vcmask 261120
    %v43 = vsel %vm41, %v27, 0
    %v46 = vsel %vm41, %v28, 0
    %v49 = vsel %vm41, %v29, 0
    %v52 = vsel %vm41, %v30, 0
    %v55 = vsel %vm41, %v31, 0
    %v58 = vsel %vm41, %v32, 0
    %v61 = vsel %vm41, %v33, 0
    %v64 = vsel %vm41, %v34, 0
    %v67 = vsel %vm41, %v35, 0
    %v70 = vsel %vm41, %v36, 0
    %72 = vmatpush.xpose.msra.mxu0 0.0
    %73 = vmatpush.xpose.msra.mxu0 0.0
    %74 = vmatpush.xpose.msra.mxu0 0.0
    %75 = vmatpush.xpose.msra.mxu0 0.0
    %76 = vmatpush.xpose.msra.mxu0 0.0
    %77 = vmatpush.xpose.msra.mxu0 0.0
    %78 = vmatpush.xpose.msra.mxu0 0.0
    %79 = vmatpush.xpose.msra.mxu0 0.0
    %80 = vmatpush.xpose.msra.mxu0 %v70
    %81 = vmatpush.xpose.msra.mxu0 %v67
    %82 = vmatpush.xpose.msra.mxu0 %v64
    %83 = vmatpush.xpose.msra.mxu0 %v61
    %84 = vmatpush.xpose.msra.mxu0 %v58
    %85 = vmatpush.xpose.msra.mxu0 %v55
    %86 = vmatpush.xpose.msra.mxu0 %v52
    %87 = vmatpush.xpose.msra.mxu0 %v49
    %88 = vmatmul.f32.gmra.mxu0 %v43
    %v89 = vpop.f32.mrf.mxu0
    %v90 = vadd.f32 %v39, %v89
    %91 = vmatmul.f32.gmra.mxu0 %v46
    %v92 = vpop.f32.mrf.mxu0
    %v93 = vadd.f32 %v39, %v92
    %94 = vdwg.mxu0
    %v95 = vmax.f32 %v90, 0.0
    %v96 = vmax.f32 %v93, 0.0
    %v97 = vld [vmem:[%s3] sm:$0xff]
    %v98 = vld [vmem:[%s3 + $0x8] sm:$0xff]
    %v99 = vld [vmem:[%s3 + $0x10] sm:$0xff]
    %v100 = vld [vmem:[%s3 + $0x18] sm:$0xff]
    %v101 = vld [vmem:[%s3 + $0x20] sm:$0xff]
    %v102 = vld [vmem:[%s3 + $0x28] sm:$0xff]
    %v103 = vld [vmem:[%s3 + $0x30] sm:$0xff]
    %v104 = vld [vmem:[%s3 + $0x38] sm:$0xff]
    %v105 = vld [vmem:[%s4] sm:$0x1]
    %v107 = vperm.slane %v105, 0
    %vm109 = vcmask 523264
    %v111 = vsel %vm109, %v95, 0
    %v114 = vsel %vm109, %v96, 0
    %v117 = vsel %vm109, %v97, 0
    %v120 = vsel %vm109, %v98, 0
    %v123 = vsel %vm109, %v99, 0
    %v126 = vsel %vm109, %v100, 0
    %v129 = vsel %vm109, %v101, 0
    %v132 = vsel %vm109, %v102, 0
    %v135 = vsel %vm109, %v103, 0
    %v138 = vsel %vm109, %v104, 0
    %140 = vmatpush.xpose.msra.mxu0 0.0
    %141 = vmatpush.xpose.msra.mxu0 0.0
    %142 = vmatpush.xpose.msra.mxu0 0.0
    %143 = vmatpush.xpose.msra.mxu0 0.0
    %144 = vmatpush.xpose.msra.mxu0 0.0
    %145 = vmatpush.xpose.msra.mxu0 0.0
    %146 = vmatpush.xpose.msra.mxu0 0.0
    %147 = vmatpush.xpose.msra.mxu0 0.0
    %148 = vmatpush.xpose.msra.mxu0 %v138
    %149 = vmatpush.xpose.msra.mxu0 %v135
    %150 = vmatpush.xpose.msra.mxu0 %v132
    %151 = vmatpush.xpose.msra.mxu0 %v129
    %152 = vmatpush.xpose.msra.mxu0 %v126
    %153 = vmatpush.xpose.msra.mxu0 %v123
    %154 = vmatpush.xpose.msra.mxu0 %v120
    %155 = vmatpush.xpose.msra.mxu0 %v117
    %156 = vmatmul.f32.gmra.mxu0 %v111
    %v157 = vpop.f32.mrf.mxu0
    %v158 = vadd.f32 %v107, %v157
    %159 = vmatmul.f32.gmra.mxu0 %v114
    %v160 = vpop.f32.mrf.mxu0
    %v161 = vadd.f32 %v107, %v160
    %162 = vdwg.mxu0
    %v163 = vmax.f32 %v158, 0.0
    %v164 = vmax.f32 %v161, 0.0
    %v165 = vld [vmem:[%s5] sm:$0xff]
    %v166 = vld [vmem:[%s5 + $0x8] sm:$0xff]
    %v167 = vld [vmem:[%s6] sm:$0x1]
    %v169 = vperm.slane %v167, 0
    %v172 = vsel %vm109, %v163, 0
    %v175 = vsel %vm109, %v164, 0
    %v178 = vsel %vm109, %v165, 0
    %v181 = vsel %vm109, %v166, 0
    %183 = vmatpush.xpose.msra.mxu0 0.0
    %184 = vmatpush.xpose.msra.mxu0 0.0
    %185 = vmatpush.xpose.msra.mxu0 0.0
    %186 = vmatpush.xpose.msra.mxu0 0.0
    %187 = vmatpush.xpose.msra.mxu0 0.0
    %188 = vmatpush.xpose.msra.mxu0 0.0
    %189 = vmatpush.xpose.msra.mxu0 0.0
    %190 = vmatpush.xpose.msra.mxu0 0.0
    %191 = vmatpush.xpose.msra.mxu0 0.0
    %192 = vmatpush.xpose.msra.mxu0 0.0
    %193 = vmatpush.xpose.msra.mxu0 0.0
    %194 = vmatpush.xpose.msra.mxu0 0.0
    %195 = vmatpush.xpose.msra.mxu0 0.0
    %196 = vmatpush.xpose.msra.mxu0 0.0
    %197 = vmatpush.xpose.msra.mxu0 %v181
    %198 = vmatpush.xpose.msra.mxu0 %v178
    %199 = vmatmul.f32.gmra.mxu0 %v172
    %v200 = vpop.f32.mrf.mxu0
    %v201 = vadd.f32 %v169, %v200
    %202 = vmatmul.f32.gmra.mxu0 %v175
    %v203 = vpop.f32.mrf.mxu0
    %v204 = vadd.f32 %v169, %v203
    %205 = vdwg.mxu0
    %vm206 = vcmask 130048
    %207 = vst.msk [vmem:[#allocation2] sm:$0xff] %vm206, %v201
    %208 = vst.msk [vmem:[#allocation2 + $0x8] sm:$0xff] %vm206, %v204
    // Predicated region
    $region30: #{mlp_forward.1} parent=1 // pred_check
      _
    $region31: #{mlp_forward.1} parent=1 // pred_check_branch
      %210 = sbr.rel (0) target = $region33
    $region32: #{mlp_forward.1} parent=1 // pred_region
      %212 = vsyncadd [#allocation3], 0
      %s213 = sshll.u32 [#allocation2], 4
      %s214 = int_to_ptr.vmem [resolvable:$true] %s213
      %s215 = sshll.u32 %s7, 4
      %s216 = int_to_ptr.hbm [resolvable:$true] %s215
      %221 = dma.vmem_to_hbm [thread:$0]  %s214, 256, %s216, [#allocation3], 128, 128, 8
    $region33: #{mlp_forward.1} parent=1 // pred_fallthru
      _
    // Predicated region
    $region34: #{mlp_forward.1} parent=1 // pred_check
      _
    $region35: #{mlp_forward.1} parent=1 // pred_check_branch
      %223 = sbr.rel (0) target = $region37
    $region36: #{mlp_forward.1} parent=1 // pred_region
      %225 = dma.done [#allocation3], 256
    $region37: #{mlp_forward.1} parent=1 // pred_fallthru
      _
    %226 = vsyncpa [#allocation3], 1

</llo_original>
